<compile_context>
chip_gen: v5e
topology: v5e:2x2
jax: 0.10.0
libtpu: 0.0.40
codegen_flags: <defaults>
</compile_context>

<pallas_src>
import functools

import jax
import jax.numpy as jnp
from jax.experimental import pallas as pl
from jax.experimental.pallas import tpu as pltpu

BN_EPS = 1e-5
# Generous for v5e/v6e (128 MiB physical VMEM) while staying safely under the
# v7x 64 MiB-per-TensorCore ceiling.
VMEM_LIMIT_BYTES = 48 * 1024 * 1024


# ----------------------------------------------------------------------------
# Pallas kernels
# ----------------------------------------------------------------------------
def _gemm_bias_act_kernel(a_ref, b_ref, shift_ref, *rest, relu, has_residual):
    """out = maybe_relu((a @ b) + shift [+ residual]).

    The BN scale is pre-folded into b's columns, so the epilogue is shift-only.
    Grid = (M tiles, N tiles, K tiles); K innermost; f32 accumulator scratch;
    epilogue runs in f32 and casts once at the store.
    """
    if has_residual:
        res_ref, o_ref, acc_ref = rest
    else:
        o_ref, acc_ref = rest

    k = pl.program_id(2)

    @pl.when(k == 0)
    def _():
        acc_ref[...] = jnp.zeros_like(acc_ref)

    acc_ref[...] += jnp.dot(a_ref[...], b_ref[...],
                            preferred_element_type=jnp.float32)

    @pl.when(k == pl.num_programs(2) - 1)
    def _():
        out = acc_ref[...] + shift_ref[...]
        if has_residual:
            out = out + res_ref[...].astype(jnp.float32)
        if relu:
            out = jnp.maximum(out, 0.0)
        o_ref[...] = out.astype(o_ref.dtype)


def _conv3x3_s1_kernel(x_ref, w_ref, shift_ref, *rest, relu, has_residual):
    """Stride-1 3x3 conv + BN shift [+ residual] [+ ReLU] for one image.

    x_ref:  (1, H+2, W+2, Cin)  padded activation, read once (no im2col)
    w_ref:  (9, Cin, Cout)      BN-scale-folded weights, tap-major
    The 9 taps are folded into the reduction in-kernel with small MXU matmuls.
    """
    if has_residual:
        res_ref, o_ref = rest
    else:
        (o_ref,) = rest
    _, H, W, cout = o_ref.shape
    shift = shift_ref[...]                                    # (1, Cout) f32

    # TODO(synk): for large H, switch this static unroll to lax.fori_loop over
    # row bands to bound code size (H <= 16 in this model configuration).
    for oy in range(H):
        acc = jnp.zeros((W, cout), jnp.float32)
        for ky in range(3):
            for kx in range(3):
                a = x_ref[0, oy + ky, pl.ds(kx, W), :]        # (W, Cin)
                acc = acc + jnp.dot(a, w_ref[ky * 3 + kx],
                                    preferred_element_type=jnp.float32)
        out = acc + shift
        if has_residual:
            out = out + res_ref[0, oy].astype(jnp.float32)
        if relu:
            out = jnp.maximum(out, 0.0)
        o_ref[0, oy] = out.astype(o_ref.dtype)


def _maxpool_kernel(x0_ref, x1_ref, x2_ref, o_ref):
    """Separable 3x3/s2/p1 max pool, per image.

    x*_ref: (1, OH+1, 2, OW, C) — the three stride-2 W-shifted views of the
    (-inf padded) input, with the padded-H axis pre-split into (OH+1, 2).
    """
    w = jnp.maximum(jnp.maximum(x0_ref[...], x1_ref[...]), x2_ref[...])
    oh = o_ref.shape[1]
    o_ref[...] = jnp.maximum(jnp.maximum(w[:, :oh, 0], w[:, :oh, 1]),
                             w[:, 1:oh + 1, 0])


def _avgpool_kernel(x_ref, o_ref):
    # x_ref: (nb, H*W, C) -> mean over the spatial axis (f32 accumulation).
    o_ref[...] = jnp.mean(x_ref[...].astype(jnp.float32),
                          axis=1).astype(o_ref.dtype)


# ----------------------------------------------------------------------------
# Fused GEMM (stride-2 convs, 1x1 shortcuts, stem, FC)
# ----------------------------------------------------------------------------
def _pick_tk(K, full_max=1024):
    """Divisor-aligned K tile: full K when small; otherwise the largest
    multiple of 256 (MXU depth on v6e/v7x) or 128 dividing K and <= 1024.
    Guarded: never returns an oversized non-divisor tile."""
    if K <= full_max:
        return K
    for quantum in (256, 128):
        d = (1024 // quantum) * quantum
        while d >= quantum:
            if K % d == 0:
                return d
            d -= quantum
    raise ValueError(f"K={K} has no 128-aligned divisor <= 1024; pad K first.")


def fused_gemm(a, b, shift, residual=None, relu=False,
               out_dtype=jnp.bfloat16, tm_max=512, tn_max=512):
    """out = maybe_relu(a @ b + shift [+ residual]); a:(M,K), b:(K,N) bf16."""
    M, K = a.shape
    K2, N = b.shape
    assert K == K2

    tm = M if M <= tm_max else tm_max            # tm_max is a multiple of 8
    tn = N if N <= tn_max else tn_max            # tn_max is a multiple of 128
    # v7x has 2 TensorCores: guarantee >= 2 blocks along the parallel axes
    # when the natural tiling would produce a (1, 1, nk) grid.
    if pl.cdiv(M, tm) * pl.cdiv(N, tn) < 2:
        if tn % 256 == 0:
            tn //= 2
        elif tm % 16 == 0 and tm >= 16:
            tm //= 2
    tk = _pick_tk(K)
    assert K % tk == 0, (K, tk)
    nm, nn, nk = pl.cdiv(M, tm), pl.cdiv(N, tn), K // tk

    has_residual = residual is not None
    # TODO(synk): sweep pipeline_mode=pl.Buffered(3) on the A/B specs once the
    # BlockSpec pipeline_mode kwarg is available in the deployed JAX version.
    in_specs = [
        pl.BlockSpec((tm, tk), lambda i, j, k: (i, k)),
        pl.BlockSpec((tk, tn), lambda i, j, k: (k, j)),
        pl.BlockSpec((1, tn), lambda i, j, k: (0, j)),
    ]
    args = [a, b, shift.reshape(1, N).astype(jnp.float32)]
    bytes_accessed = (M * K * a.dtype.itemsize * nn      # A re-read per N tile
                      + K * N * b.dtype.itemsize * nm    # B re-read per M tile
                      + M * N * jnp.dtype(out_dtype).itemsize
                      + 4 * N)
    if has_residual:
        in_specs.append(pl.BlockSpec((tm, tn), lambda i, j, k: (i, j)))
        args.append(residual)
        bytes_accessed += M * N * residual.dtype.itemsize

    kern = functools.partial(_gemm_bias_act_kernel, relu=relu,
                             has_residual=has_residual)
    return pl.pallas_call(
        kern,
        out_shape=jax.ShapeDtypeStruct((M, N), out_dtype),
        grid=(nm, nn, nk),
        in_specs=in_specs,
        out_specs=pl.BlockSpec((tm, tn), lambda i, j, k: (i, j)),
        scratch_shapes=[pltpu.VMEM((tm, tn), jnp.float32)],
        compiler_params=pltpu.CompilerParams(
            dimension_semantics=("parallel", "parallel", "arbitrary"),
            vmem_limit_bytes=VMEM_LIMIT_BYTES),
        cost_estimate=pl.CostEstimate(flops=2 * M * N * K, transcendentals=0,
                                      bytes_accessed=int(bytes_accessed)),
    )(*args)


# ----------------------------------------------------------------------------
# Conv / pool wrappers
# ----------------------------------------------------------------------------
def conv3x3_s1(x, w_tap, shift, relu, residual=None):
    """Fused stride-1 3x3 conv + BN [+ residual] [+ ReLU]; x NHWC bf16."""
    N, H, W, C = x.shape
    cout = w_tap.shape[-1]
    xp = jnp.pad(x, ((0, 0), (1, 1), (1, 1), (0, 0)))
    has_res = residual is not None

    in_specs = [
        pl.BlockSpec((1, H + 2, W + 2, C), lambda b: (b, 0, 0, 0)),
        pl.BlockSpec((9, C, cout), lambda b: (0, 0, 0)),
        pl.BlockSpec((1, cout), lambda b: (0, 0)),
    ]
    args = [xp, w_tap, shift.reshape(1, cout).astype(jnp.float32)]
    bytes_accessed = (xp.size * xp.dtype.itemsize
                      + N * w_tap.size * w_tap.dtype.itemsize
                      + N * H * W * cout * 2 + 4 * cout)
    if has_res:
        in_specs.append(pl.BlockSpec((1, H, W, cout), lambda b: (b, 0, 0, 0)))
        args.append(residual)
        bytes_accessed += residual.size * residual.dtype.itemsize

    kern = functools.partial(_conv3x3_s1_kernel, relu=relu,
                             has_residual=has_res)
    return pl.pallas_call(
        kern,
        out_shape=jax.ShapeDtypeStruct((N, H, W, cout), jnp.bfloat16),
        grid=(N,),
        in_specs=in_specs,
        out_specs=pl.BlockSpec((1, H, W, cout), lambda b: (b, 0, 0, 0)),
        compiler_params=pltpu.CompilerParams(
            dimension_semantics=("parallel",),
            vmem_limit_bytes=VMEM_LIMIT_BYTES),
        cost_estimate=pl.CostEstimate(flops=2 * N * H * W * 9 * C * cout,
                                      transcendentals=0,
                                      bytes_accessed=int(bytes_accessed)),
    )(*args)


def _im2col(x, kh, kw, stride, pad):
    """x: (N,H,W,C) -> (N*OH*OW, kh*kw*C); pad is int or ((pt,pb),(pl,pr))."""
    N, H, W, C = x.shape
    if isinstance(pad, int):
        pad = ((pad, pad), (pad, pad))
    (pt, pb), (pw0, pw1) = pad
    xp = jnp.pad(x, ((0, 0), (pt, pb), (pw0, pw1), (0, 0)))
    OH = (H + pt + pb - kh) // stride + 1
    OW = (W + pw0 + pw1 - kw) // stride + 1
    cols = [xp[:, i:i + stride * (OH - 1) + 1:stride,
               j:j + stride * (OW - 1) + 1:stride, :]
            for i in range(kh) for j in range(kw)]
    cols = jnp.stack(cols, axis=3)                     # (N, OH, OW, kh*kw, C)
    return cols.reshape(N * OH * OW, kh * kw * C), OH, OW


def conv_gemm(x, wmat, shift, kh, kw, stride, pad, relu, residual=None):
    """Conv via im2col + fused GEMM — kept only for the few stride-2 convs and
    the 1x1 shortcuts (no expansion for 1x1).
    TODO(synk): fold these taps in-kernel too via strided reads."""
    N = x.shape[0]
    cout = wmat.shape[1]
    cols, OH, OW = _im2col(x, kh, kw, stride, pad)
    res = None if residual is None else residual.reshape(N * OH * OW, cout)
    out = fused_gemm(cols, wmat, shift, residual=res, relu=relu,
                     out_dtype=jnp.bfloat16)
    return out.reshape(N, OH, OW, cout)


def stem_conv(x, wmat, shift):
    """conv1: 7x7/s2/p3 on a 1-channel input, reformulated via 2x2
    space-to-depth as a 4x4 stride-1 conv on (N, H/2, W/2, 4): K 49 -> 64,
    denser MXU feed; then the shared fused GEMM (BN + ReLU fused)."""
    N, H, W, C = x.shape
    assert C == 1 and H % 2 == 0 and W % 2 == 0
    x2 = x.reshape(N, H // 2, 2, W // 2, 2, 1)
    x2 = jnp.transpose(x2, (0, 1, 3, 2, 4, 5)).reshape(N, H // 2, W // 2, 4)
    cols, OH, OW = _im2col(x2, 4, 4, stride=1, pad=((2, 1), (2, 1)))
    out = fused_gemm(cols, wmat, shift, relu=True, out_dtype=jnp.bfloat16)
    return out.reshape(N, OH, OW, wmat.shape[1])


def maxpool_3x3_s2_p1(x):
    """MaxPool2d(kernel=3, stride=2, padding=1) on NHWC, separable form:
    glue extracts 3 stride-2 W-shifted views (~3x intermediate instead of the
    previous 9x stack); one per-image Pallas kernel fuses the W- and H-max."""
    N, H, W, C = x.shape
    OH = (H - 1) // 2 + 1
    OW = (W - 1) // 2 + 1
    Hp = 2 * (OH + 1)
    pad_b = Hp - (H + 1)
    pad_r = max(2 * OW - W, 0)
    xp = jnp.pad(x, ((0, 0), (1, pad_b), (1, pad_r), (0, 0)),
                 constant_values=-jnp.inf)
    views = [xp[:, :, j:j + 2 * OW - 1:2, :].reshape(N, Hp // 2, 2, OW, C)
             for j in range(3)]
    return pl.pallas_call(
        _maxpool_kernel,
        out_shape=jax.ShapeDtypeStruct((N, OH, OW, C), x.dtype),
        grid=(N,),
        in_specs=[pl.BlockSpec((1, Hp // 2, 2, OW, C),
                               lambda b: (b, 0, 0, 0, 0))] * 3,
        out_specs=pl.BlockSpec((1, OH, OW, C), lambda b: (b, 0, 0, 0)),
        compiler_params=pltpu.CompilerParams(
            dimension_semantics=("parallel",),
            vmem_limit_bytes=VMEM_LIMIT_BYTES),
    )(*views)


def global_avgpool(x):
    """AdaptiveAvgPool2d((1,1)) + flatten: NHWC -> (N, C) in f32."""
    N, H, W, C = x.shape
    xf = x.reshape(N, H * W, C)
    nb = N if N <= 8 else 8
    return pl.pallas_call(
        _avgpool_kernel,
        out_shape=jax.ShapeDtypeStruct((N, C), jnp.float32),
        grid=(pl.cdiv(N, nb),),
        in_specs=[pl.BlockSpec((nb, H * W, C), lambda i: (i, 0, 0))],
        out_specs=pl.BlockSpec((nb, C), lambda i: (i, 0)),
        compiler_params=pltpu.CompilerParams(
            dimension_semantics=("parallel",),
            vmem_limit_bytes=VMEM_LIMIT_BYTES),
    )(xf)


# ----------------------------------------------------------------------------
# Parameter initialization (mirrors _initialize_weights) + kernel-layout fold
# ----------------------------------------------------------------------------
def _kaiming(key, shape):
    # kaiming_normal_, mode='fan_out', relu => std = sqrt(2 / (cout*kh*kw))
    fan_out = shape[0] * shape[2] * shape[3]
    std = (2.0 / fan_out) ** 0.5
    return std * jax.random.normal(key, shape, jnp.float32)


def _bn_fold(cout):
    # Inference-mode BatchNorm with fresh-init stats folded to (scale, shift).
    gamma = jnp.ones((cout,), jnp.float32)
    beta = jnp.zeros((cout,), jnp.float32)
    mean = jnp.zeros((cout,), jnp.float32)
    var = jnp.ones((cout,), jnp.float32)
    scale = gamma / jnp.sqrt(var + BN_EPS)
    shift = beta - mean * scale
    return scale, shift


def _fold_conv_gemm(w, scale):
    """(cout,cin,kh,kw) f32 -> im2col weight matrix (kh*kw*cin, cout) bf16
    with the BN scale folded into the output columns."""
    cout, cin, kh, kw = w.shape
    m = jnp.transpose(w, (2, 3, 1, 0)).reshape(kh * kw * cin, cout)
    return (m * scale[None, :]).astype(jnp.bfloat16)


def _fold_conv_tap(w, scale):
    """(cout,cin,3,3) f32 -> tap-major weights (9, cin, cout) bf16, BN-folded."""
    cout, cin, kh, kw = w.shape
    m = jnp.transpose(w, (2, 3, 1, 0)).reshape(kh * kw, cin, cout)
    return (m * scale[None, None, :]).astype(jnp.bfloat16)


def _fold_stem_s2d(w, scale):
    """conv1 weight (64,1,7,7) -> space-to-depth 4x4-conv weight matrix
    (4*4*4, 64) bf16 (im2col ordering, BN scale folded).
    Tap mapping: original index k in 0..6 -> (a, d) with d = (k+1) % 2,
    a = (k - 3 - d)//2 + 2  (i.e. k = 2a + d - 1); s2d channel = dy*2 + dx."""
    cout = w.shape[0]
    wq = jnp.zeros((4, 4, 4, cout), jnp.float32)       # (ay, ax, dy*2+dx, co)
    for ky in range(7):
        dy = (ky + 1) % 2
        ay = (ky - 3 - dy) // 2 + 2
        for kx in range(7):
            dx = (kx + 1) % 2
            ax = (kx - 3 - dx) // 2 + 2
            wq = wq.at[ay, ax, dy * 2 + dx, :].set(w[:, 0, ky, kx])
    m = wq.reshape(4 * 4 * 4, cout)
    return (m * scale[None, :]).astype(jnp.bfloat16)


def init_params(key, embedding_size):
    keys = jax.random.split(key, 64)
    ki = iter(keys)
    params = {"embedding_size": embedding_size}

    w1 = _kaiming(next(ki), (64, 1, 7, 7))
    sc, sh = _bn_fold(64)
    params["stem_wmat"] = _fold_stem_s2d(w1, sc)
    params["stem_shift"] = sh

    layer_cfg = [(64, 64, 1), (64, 128, 2), (128, 256, 2), (256, 512, 2)]
    layers = []
    for cin, cout, stride in layer_cfg:
        blocks = []
        for b in range(2):
            st = stride if b == 0 else 1
            c_in = cin if b == 0 else cout
            w1r = _kaiming(next(ki), (cout, c_in, 3, 3))
            w2r = _kaiming(next(ki), (cout, cout, 3, 3))
            sc1, sh1 = _bn_fold(cout)
            sc2, sh2 = _bn_fold(cout)
            blk = {"stride": st, "shift1": sh1, "shift2": sh2,
                   "w2_tap": _fold_conv_tap(w2r, sc2)}
            if st == 1:
                blk["w1_tap"] = _fold_conv_tap(w1r, sc1)
            else:
                blk["w1_mat"] = _fold_conv_gemm(w1r, sc1)
            if st != 1 or c_in != cout:
                wsr = _kaiming(next(ki), (cout, c_in, 1, 1))
                scs, shs = _bn_fold(cout)
                blk["shortcut_wmat"] = _fold_conv_gemm(wsr, scs)
                blk["shortcut_shift"] = shs
            blocks.append(blk)
        layers.append(blocks)
    params["layers"] = layers

    fc_w = 0.01 * jax.random.normal(next(ki), (embedding_size, 512),
                                    jnp.float32)
    fc_b = jnp.zeros((embedding_size,), jnp.float32)
    n_pad = ((embedding_size + 127) // 128) * 128       # lane-dense FC output
    params["fc_wmat"] = (jnp.zeros((512, n_pad), jnp.float32)
                         .at[:, :embedding_size].set(fc_w.T)
                         .astype(jnp.bfloat16))
    params["fc_shift"] = (jnp.zeros((n_pad,), jnp.float32)
                          .at[:embedding_size].set(fc_b))
    return params


# ----------------------------------------------------------------------------
# Forward pass
# ----------------------------------------------------------------------------
def res_block_forward(x, blk):
    st = blk["stride"]
    if "shortcut_wmat" in blk:
        shortcut = conv_gemm(x, blk["shortcut_wmat"], blk["shortcut_shift"],
                             kh=1, kw=1, stride=st, pad=0, relu=False)
    else:
        shortcut = x
    if st == 1:
        out = conv3x3_s1(x, blk["w1_tap"], blk["shift1"], relu=True)
    else:
        out = conv_gemm(x, blk["w1_mat"], blk["shift1"], kh=3, kw=3,
                        stride=st, pad=1, relu=True)
    # conv2 + bn2 + residual add + final ReLU fused in one Pallas call
    return conv3x3_s1(out, blk["w2_tap"], blk["shift2"], relu=True,
                      residual=shortcut)


def resnet_forward(params, x_nchw):
    # x_nchw: (N, 1, H, W) PyTorch layout -> NHWC bf16 internally
    x = jnp.transpose(x_nchw, (0, 2, 3, 1)).astype(jnp.bfloat16)
    x = stem_conv(x, params["stem_wmat"], params["stem_shift"])
    x = maxpool_3x3_s2_p1(x)
    for blocks in params["layers"]:
        for blk in blocks:
            x = res_block_forward(x, blk)
    feat = global_avgpool(x)                           # (N, 512) f32
    out = fused_gemm(feat.astype(jnp.bfloat16), params["fc_wmat"],
                     params["fc_shift"], relu=False, out_dtype=jnp.float32)
    return out[:, :params["embedding_size"]]


# ----------------------------------------------------------------------------
if __name__ == "__main__":
    key = jax.random.PRNGKey(0)
    pkey, xkey = jax.random.split(key)

    embedding_size = 32
    params = init_params(pkey, embedding_size)

    # small deterministic input: batch=2, 1 channel, 32x32 spatial
    x = jax.random.normal(xkey, (2, 1, 32, 32), jnp.float32)

    out = resnet_forward(params, x)
    out = jax.block_until_ready(out)
    assert out.shape == (2, embedding_size)
    assert bool(jnp.all(jnp.isfinite(out)))
    print("KERNEL_OK")
</pallas_src>

<mosaic_0001>
module attributes {stable_mosaic.version = 11 : i64} {
  func.func @_gemm_bias_act_kernel(%arg0: i32, %arg1: i32, %arg2: i32, %arg3: memref<256x64xbf16, #tpu.memory_space<vmem>>, %arg4: memref<64x64xbf16, #tpu.memory_space<vmem>>, %arg5: memref<1x64xf32, #tpu.memory_space<vmem>>, %arg6: memref<256x64xbf16, #tpu.memory_space<vmem>>, %arg7: memref<256x64xf32, #tpu.memory_space<vmem>>) attributes {dimension_semantics = [#tpu.dimension_semantics<parallel>, #tpu.dimension_semantics<parallel>, #tpu.dimension_semantics<arbitrary>], iteration_bounds = array<i64: 2, 1, 1>, scalar_prefetch = 0 : i64, scratch_operands = 1 : i64, tpu.core_type = #tpu.core_type<tc>, window_params = [{transform_indices = @transform_0, window_bounds = array<i64: 256, 64>}, {transform_indices = @transform_1, window_bounds = array<i64: 64, 64>}, {transform_indices = @transform_2, window_bounds = array<i64: 1, 64>}, {transform_indices = @transform_3, window_bounds = array<i64: 256, 64>}]} {
    %c0_i32 = arith.constant 0 : i32
    %0 = arith.cmpi eq, %arg2, %c0_i32 : i32
    %1 = arith.extui %0 : i1 to i32
    %c0_i32_0 = arith.constant 0 : i32
    %2 = arith.cmpi ne, %1, %c0_i32_0 : i32
    scf.if %2 {
      %cst_10 = arith.constant 0.000000e+00 : f32
      %12 = vector.broadcast %cst_10 : f32 to vector<256x64xf32>
      %c0_11 = arith.constant 0 : index
      %c0_12 = arith.constant 0 : index
      %13 = vector.load %arg7[%c0_11, %c0_12] : memref<256x64xf32, #tpu.memory_space<vmem>>, vector<256x64xf32>
      tpu.vector_store %arg7[%c0_11, %c0_12], %12 {strides = array<i32>} : memref<256x64xf32, #tpu.memory_space<vmem>>, vector<256x64xf32>,
    } else {
    }
    %c0 = arith.constant 0 : index
    %c0_1 = arith.constant 0 : index
    %3 = vector.load %arg7[%c0, %c0_1] : memref<256x64xf32, #tpu.memory_space<vmem>>, vector<256x64xf32>
    %c0_2 = arith.constant 0 : index
    %c0_3 = arith.constant 0 : index
    %4 = vector.load %arg3[%c0_2, %c0_3] : memref<256x64xbf16, #tpu.memory_space<vmem>>, vector<256x64xbf16>
    %c0_4 = arith.constant 0 : index
    %c0_5 = arith.constant 0 : index
    %5 = vector.load %arg4[%c0_4, %c0_5] : memref<64x64xbf16, #tpu.memory_space<vmem>>, vector<64x64xbf16>
    %cst = arith.constant dense<0.000000e+00> : vector<256x64xf32>
    %6 = tpu.matmul %4, %5, %cst {dimension_numbers = #tpu.dot_dimension_numbers<[1], [0], [0], [1], [0, 0, 1, 1], [], []>} : vector<256x64xbf16>, vector<64x64xbf16>, vector<256x64xf32> -> vector<256x64xf32>
    %7 = arith.addf %3, %6 : vector<256x64xf32>
    %c0_6 = arith.constant 0 : index
    %c0_7 = arith.constant 0 : index
    %8 = vector.load %arg7[%c0_6, %c0_7] : memref<256x64xf32, #tpu.memory_space<vmem>>, vector<256x64xf32>
    tpu.vector_store %arg7[%c0_6, %c0_7], %7 {strides = array<i32>} : memref<256x64xf32, #tpu.memory_space<vmem>>, vector<256x64xf32>,
    %c0_i32_8 = arith.constant 0 : i32
    %9 = arith.cmpi eq, %arg2, %c0_i32_8 : i32
    %10 = arith.extui %9 : i1 to i32
    %c0_i32_9 = arith.constant 0 : i32
    %11 = arith.cmpi ne, %10, %c0_i32_9 : i32
    scf.if %11 {
      %c0_10 = arith.constant 0 : index
      %c0_11 = arith.constant 0 : index
      %12 = vector.load %arg7[%c0_10, %c0_11] : memref<256x64xf32, #tpu.memory_space<vmem>>, vector<256x64xf32>
      %c0_12 = arith.constant 0 : index
      %c0_13 = arith.constant 0 : index
      %13 = vector.load %arg5[%c0_12, %c0_13] : memref<1x64xf32, #tpu.memory_space<vmem>>, vector<1x64xf32>
      %14 = vector.broadcast %13 : vector<1x64xf32> to vector<256x64xf32>
      %15 = arith.addf %12, %14 : vector<256x64xf32>
      %cst_14 = arith.constant 0.000000e+00 : f32
      %16 = vector.broadcast %cst_14 : f32 to vector<256x64xf32>
      %17 = arith.maximumf %15, %16 : vector<256x64xf32>
      %18 = arith.truncf %17 : vector<256x64xf32> to vector<256x64xbf16>
      %c0_15 = arith.constant 0 : index
      %c0_16 = arith.constant 0 : index
      %19 = vector.load %arg6[%c0_15, %c0_16] : memref<256x64xbf16, #tpu.memory_space<vmem>>, vector<256x64xbf16>
      tpu.vector_store %arg6[%c0_15, %c0_16], %18 {strides = array<i32>} : memref<256x64xbf16, #tpu.memory_space<vmem>>, vector<256x64xbf16>,
    } else {
    }
    return
  }
  func.func @transform_0(%arg0: i32, %arg1: i32, %arg2: i32) -> (i32, i32) {
    %c0_i32 = arith.constant 0 : i32
    return %arg0, %arg2 : i32, i32
  }
  func.func @transform_1(%arg0: i32, %arg1: i32, %arg2: i32) -> (i32, i32) {
    %c0_i32 = arith.constant 0 : i32
    return %arg2, %arg1 : i32, i32
  }
  func.func @transform_2(%arg0: i32, %arg1: i32, %arg2: i32) -> (i32, i32) {
    %c0_i32 = arith.constant 0 : i32
    %c0_i32_0 = arith.constant 0 : i32
    return %c0_i32, %arg1 : i32, i32
  }
  func.func @transform_3(%arg0: i32, %arg1: i32, %arg2: i32) -> (i32, i32) {
    %c0_i32 = arith.constant 0 : i32
    return %arg0, %arg1 : i32, i32
  }
}

</mosaic_0001>

<llo_original>
// kernel: tpu_custom_call.1
$region0: #{tpu_custom_call.1}
  #allocation0 [shape = 'u32[]', space=smem, size = 0x4, offset = 0x4, fixed_abs, tag = 'smem constant byte address 0x4 - core index']
  #allocation1 [shape = 'u32[72,128]{1,0:T(1,128)}', space=vmem, size = 0x9000, scoped, tag = 'internal scratch']
  #allocation2 [shape = 'f32[256,64]{1,0:T(8,128)}', space=vmem, size = 0x20000, scoped, tag = 'scratch operand']
  %s0 = inlined_call_operand.vmem [shape: bf16[512,64], index: 0, kind: input, shape index: {}]
  %s1 = inlined_call_operand.vmem [shape: bf16[64,64], index: 1, kind: input, shape index: {}]
  %s2 = inlined_call_operand.vmem [shape: f32[1,64], index: 2, kind: input, shape index: {}]
  %s3 = inlined_call_operand.vmem [shape: bf16[512,64], index: 3, kind: output, shape index: {}]
  %s4 = sld [smem:[#allocation0]]
  $region53: #{tpu_custom_call.1} parent=0
    _
  %s6 = ssub.s32 1, %s4
  %s7 = scalar_select 0, %s6, %s4
  loop: start=0, step=1, limit=4
  $region2: #{tpu_custom_call.1} parent=0 // loop_pre_header
    _
  $region3: #{tpu_custom_call.1} parent=0 // loop_header
    %s9 = sphi 0, %s13
    %p10 = scmp.ge.s32.totalorder %s9, 4
    %s16 = sphi 0, %s35
    %s17 = sphi 0, %s31
    %s18 = sphi 0, %s27
    %s19 = sphi 0, %s16
    %s20 = sphi 0, %s17
    %s21 = sphi 0, %s18
    %s22 = sphi 0, %s19
    %s23 = sphi 0, %s20
    %s24 = sphi 0, %s21
    %s40 = sphi 0, %s42
    %s43 = sphi 0, %s40
    %s44 = sphi 0, %s43
    %s60 = sphi 0, %s44
    %s68 = sphi 0, %s70
    %s71 = sphi 0, %s68
    %s72 = sphi 0, %s71
    %s88 = sphi 0, %s72
    %s94 = sphi 0, %s96
    %s97 = sphi 0, %s94
    %s98 = sphi 0, %s97
    %s114 = sphi 0, %s98
    %s122 = sphi 0, %s124
    %s125 = sphi 0, %s122
    %s126 = sphi 0, %s125
    %s142 = sphi 0, %s126
  $region4: #{tpu_custom_call.1} parent=0 // loop_header_branch
    %12 = sbr.rel (%p10) target = $region8
  $region5: #{tpu_custom_call.1} parent=0 // loop_body
    %s14 = ssub.s32 %s9, 1
    %s15 = ssub.s32 %s9, 2
    %s25 = sadd.s32 1, %s18
    %p26 = scmp.ge.s32.totalorder %s25, 1
    %s27 = scalar_select %p26, 0, %s25
    %s28 = sadd.s32 1, %s17
    %s29 = scalar_select %p26, %s28, %s17
    %p30 = scmp.ge.s32.totalorder %s29, 1
    %s31 = scalar_select %p30, 0, %s29
    %s32 = sadd.s32 1, %s16
    %s33 = scalar_select %p30, %s32, %s16
    %p34 = scmp.ge.s32.totalorder %s33, 2
    %s35 = scalar_select %p34, 0, %s33
    %s36 = ssub.s32 %s16, %s35
    %s37 = ssub.s32 %s18, %s27
    %s38 = sor.u32 %s36, %s37
    %p39 = scmp.eq.s32.totalorder %s38, 0
    %s41 = sadd.s32 %s40, 1
    %s42 = scalar_select %p39, %s40, %s41
    %p45 = pneg %p39
    %p46 = scmp.eq.s32.totalorder %s9, 1
    %p47 = por %p45, %p46
    %p48 = scmp.ne.s32.totalorder %s40, %s43
    %p49 = scmp.eq.s32.totalorder %s9, 0
    %p50 = por %p48, %p49
    %p51 = scmp.ne.s32.totalorder %s40, %s43
    %p52 = scmp.eq.s32.totalorder %s14, 1
    %p53 = por %p51, %p52
    %p54 = scmp.ne.s32.totalorder %s43, %s44
    %p55 = scmp.eq.s32.totalorder %s14, 0
    %p56 = por %p54, %p55
    %p57 = scmp.ne.s32.totalorder %s43, %s44
    %p58 = scmp.eq.s32.totalorder %s15, 1
    %p59 = por %p57, %p58
    %p61 = scmp.ne.s32.totalorder %s44, %s60
    %p62 = scmp.eq.s32.totalorder %s15, 0
    %p63 = por %p61, %p62
    %s64 = ssub.s32 %s18, %s27
    %s65 = ssub.s32 %s17, %s31
    %s66 = sor.u32 %s64, %s65
    %p67 = scmp.eq.s32.totalorder %s66, 0
    %s69 = sadd.s32 %s68, 1
    %s70 = scalar_select %p67, %s68, %s69
    %p73 = pneg %p67
    %p74 = scmp.eq.s32.totalorder %s9, 1
    %p75 = por %p73, %p74
    %p76 = scmp.ne.s32.totalorder %s68, %s71
    %p77 = scmp.eq.s32.totalorder %s9, 0
    %p78 = por %p76, %p77
    %p79 = scmp.ne.s32.totalorder %s68, %s71
    %p80 = scmp.eq.s32.totalorder %s14, 1
    %p81 = por %p79, %p80
    %p82 = scmp.ne.s32.totalorder %s71, %s72
    %p83 = scmp.eq.s32.totalorder %s14, 0
    %p84 = por %p82, %p83
    %p85 = scmp.ne.s32.totalorder %s71, %s72
    %p86 = scmp.eq.s32.totalorder %s15, 1
    %p87 = por %p85, %p86
    %p89 = scmp.ne.s32.totalorder %s72, %s88
    %p90 = scmp.eq.s32.totalorder %s15, 0
    %p91 = por %p89, %p90
    %s92 = ssub.s32 %s17, %s31
    %p93 = scmp.eq.s32.totalorder %s92, 0
    %s95 = sadd.s32 %s94, 1
    %s96 = scalar_select %p93, %s94, %s95
    %p99 = pneg %p93
    %p100 = scmp.eq.s32.totalorder %s9, 1
    %p101 = por %p99, %p100
    %p102 = scmp.ne.s32.totalorder %s94, %s97
    %p103 = scmp.eq.s32.totalorder %s9, 0
    %p104 = por %p102, %p103
    %p105 = scmp.ne.s32.totalorder %s94, %s97
    %p106 = scmp.eq.s32.totalorder %s14, 1
    %p107 = por %p105, %p106
    %p108 = scmp.ne.s32.totalorder %s97, %s98
    %p109 = scmp.eq.s32.totalorder %s14, 0
    %p110 = por %p108, %p109
    %p111 = scmp.ne.s32.totalorder %s97, %s98
    %p112 = scmp.eq.s32.totalorder %s15, 1
    %p113 = por %p111, %p112
    %p115 = scmp.ne.s32.totalorder %s98, %s114
    %p116 = scmp.eq.s32.totalorder %s15, 0
    %p117 = por %p115, %p116
    %s118 = ssub.s32 %s16, %s35
    %s119 = ssub.s32 %s17, %s31
    %s120 = sor.u32 %s118, %s119
    %p121 = scmp.eq.s32.totalorder %s120, 0
    %s123 = sadd.s32 %s122, 1
    %s124 = scalar_select %p121, %s122, %s123
    %p127 = pneg %p121
    %p128 = scmp.eq.s32.totalorder %s9, 1
    %p129 = por %p127, %p128
    %p130 = scmp.ne.s32.totalorder %s122, %s125
    %p131 = scmp.eq.s32.totalorder %s9, 0
    %p132 = por %p130, %p131
    %p133 = scmp.ne.s32.totalorder %s122, %s125
    %p134 = scmp.eq.s32.totalorder %s14, 1
    %p135 = por %p133, %p134
    %p136 = scmp.ne.s32.totalorder %s125, %s126
    %p137 = scmp.eq.s32.totalorder %s14, 0
    %p138 = por %p136, %p137
    %p139 = scmp.ne.s32.totalorder %s125, %s126
    %p140 = scmp.eq.s32.totalorder %s15, 1
    %p141 = por %p139, %p140
    %p143 = scmp.ne.s32.totalorder %s126, %s142
    %p144 = scmp.eq.s32.totalorder %s15, 0
    %p145 = por %p143, %p144
    %p146 = scmp.le.s32.totalorder 1, %s9
    %p147 = scmp.lt.s32.totalorder %s9, 3
    %p148 = pnand %p146, %p147
    %p149 = pneg %p148
    // Predicated region
    $region9: #{tpu_custom_call.1} parent=5 // pred_check
      _
    $region10: #{tpu_custom_call.1} parent=5 // pred_check_branch
      %151 = sbr.rel (%p148) target = $region12
    $region11: #{tpu_custom_call.1} parent=5 // pred_region
      %s152 = ssub.s32 %s9, 1
      // Predicated region
      $region13: #{tpu_custom_call.1} parent=11 // pred_check
        %p153 = pneg %p84
      $region14: #{tpu_custom_call.1} parent=11 // pred_check_branch
        %155 = sbr.rel (%p153) target = $region16
      $region15: #{tpu_custom_call.1} parent=11 // pred_region
        %s156 = smul.u32 8, %s21
        %p157 = scmp.lt.s32.totalorder %s156, 7
        %s158 = scalar_select %p157, %s156, 7
        %p159 = scmp.lt.s32.totalorder %s20, 0
        %s160 = scalar_select %p159, %s20, 0
        %s161 = sadd.s32 %s160, %s158
        %s162 = smul.addr %s161, 4
        %s163 = scalar_lea.vmem %s1, %s162
        %s164 = smul.u32 8, %s21
      $region16: #{tpu_custom_call.1} parent=11 // pred_fallthru
        _
      // Predicated region
      $region17: #{tpu_custom_call.1} parent=11 // pred_check
        %p165 = pneg %p110
      $region18: #{tpu_custom_call.1} parent=11 // pred_check_branch
        %167 = sbr.rel (%p165) target = $region20
      $region19: #{tpu_custom_call.1} parent=11 // pred_region
        %p168 = scmp.lt.s32.totalorder %s20, 0
        %s169 = scalar_select %p168, %s20, 0
        %s170 = scalar_lea.vmem %s2, %s169
      $region20: #{tpu_custom_call.1} parent=11 // pred_fallthru
        _
    $region12: #{tpu_custom_call.1} parent=5 // pred_fallthru
      _
    %p171 = scmp.lt.s32.totalorder %s9, 2
    // Predicated region
    $region21: #{tpu_custom_call.1} parent=5 // pred_check
      %p172 = pneg %p171
    $region22: #{tpu_custom_call.1} parent=5 // pred_check_branch
      %174 = sbr.rel (%p172) target = $region24
    $region23: #{tpu_custom_call.1} parent=5 // pred_region
      // Predicated region
      $region25: #{tpu_custom_call.1} parent=23 // pred_check
        %p175 = pneg %p50
      $region26: #{tpu_custom_call.1} parent=23 // pred_check_branch
        %177 = sbr.rel (%p175) target = $region28
      $region27: #{tpu_custom_call.1} parent=23 // pred_region
        %s178 = smul.u32 32, %s16
        %p179 = scmp.lt.s32.totalorder %s178, 63
        %s180 = scalar_select %p179, %s178, 63
        %p181 = scmp.lt.s32.totalorder %s18, 0
        %s182 = scalar_select %p181, %s18, 0
        %s183 = sadd.s32 %s182, %s180
        %s184 = smul.addr %s183, 4
        %s185 = scalar_lea.vmem %s0, %s184
        %s186 = smul.u32 32, %s16
      $region28: #{tpu_custom_call.1} parent=23 // pred_fallthru
        _
    $region24: #{tpu_custom_call.1} parent=5 // pred_fallthru
      _
    %p187 = scmp.le.s32.totalorder 1, %s9
    %p188 = scmp.lt.s32.totalorder %s9, 3
    %p189 = pnand %p187, %p188
    %p190 = pneg %p189
    // Predicated region
    $region29: #{tpu_custom_call.1} parent=5 // pred_check
      _
    $region30: #{tpu_custom_call.1} parent=5 // pred_check_branch
      %192 = sbr.rel (%p189) target = $region32
    $region31: #{tpu_custom_call.1} parent=5 // pred_region
      %s193 = ssub.s32 %s9, 1
      %s194 = smul.u32 32, %s19
      %p195 = scmp.lt.s32.totalorder %s194, 63
      %s196 = scalar_select %p195, %s194, 63
      %p197 = scmp.lt.s32.totalorder %s21, 0
      %s198 = scalar_select %p197, %s21, 0
      %s199 = sadd.s32 %s198, %s196
      %s200 = smul.addr %s199, 4
      %s201 = scalar_lea.vmem %s0, %s200
      %p202 = pneg %p56
      %p203 = pneg %p53
      %s204 = smul.u32 8, %s21
      %p205 = scmp.lt.s32.totalorder %s204, 7
      %s206 = scalar_select %p205, %s204, 7
      %p207 = scmp.lt.s32.totalorder %s20, 0
      %s208 = scalar_select %p207, %s20, 0
      %s209 = sadd.s32 %s208, %s206
      %s210 = smul.addr %s209, 4
      %s211 = scalar_lea.vmem %s1, %s210
      %p212 = pneg %p84
      %p213 = pneg %p81
      %p214 = scmp.lt.s32.totalorder %s20, 0
      %s215 = scalar_select %p214, %s20, 0
      %s216 = scalar_lea.vmem %s2, %s215
      %p217 = pneg %p110
      %p218 = pneg %p107
      %p219 = pneg %p138
      %p220 = pneg %p135
      %s221 = smul.u32 32, %s19
      %p222 = scmp.lt.s32.totalorder %s221, 63
      %s223 = scalar_select %p222, %s221, 63
      %p224 = scmp.lt.s32.totalorder %s20, 0
      %s225 = scalar_select %p224, %s20, 0
      %s226 = sadd.s32 %s225, %s223
      %s227 = smul.addr %s226, 4
      %s228 = scalar_lea.vmem %s3, %s227
      %s229 = smul.u32 32, %s19
      %p230 = scmp.lt.s32.totalorder %s229, 63
      %s231 = scalar_select %p230, %s229, 63
      %p232 = scmp.lt.s32.totalorder %s21, 0
      %s233 = scalar_select %p232, %s21, 0
      %s234 = sadd.s32 %s233, %s231
      %s235 = smul.addr %s234, 4
      %s236 = scalar_lea.vmem %s0, %s235
      %s237 = smul.u32 32, %s19
      %s238 = smul.u32 8, %s21
      %p239 = scmp.lt.s32.totalorder %s238, 7
      %s240 = scalar_select %p239, %s238, 7
      %p241 = scmp.lt.s32.totalorder %s20, 0
      %s242 = scalar_select %p241, %s20, 0
      %s243 = sadd.s32 %s242, %s240
      %s244 = smul.addr %s243, 4
      %s245 = scalar_lea.vmem %s1, %s244
      %s246 = smul.u32 8, %s21
      %p247 = scmp.lt.s32.totalorder %s20, 0
      %s248 = scalar_select %p247, %s20, 0
      %s249 = scalar_lea.vmem %s2, %s248
      %s250 = smul.u32 32, %s19
      %p251 = scmp.lt.s32.totalorder %s250, 63
      %s252 = scalar_select %p251, %s250, 63
      %p253 = scmp.lt.s32.totalorder %s20, 0
      %s254 = scalar_select %p253, %s20, 0
      %s255 = sadd.s32 %s254, %s252
      %s256 = smul.addr %s255, 4
      %s257 = scalar_lea.vmem %s3, %s256
      %s258 = smul.u32 32, %s19
      %p260 = scmp.eq.s32.totalorder %s21, 0
      // Predicated region
      $region33: #{tpu_custom_call.1} parent=31 // pred_check
        %p261 = pneg %p260
      $region34: #{tpu_custom_call.1} parent=31 // pred_check_branch
        %263 = sbr.rel (%p261) target = $region36
      $region35: #{tpu_custom_call.1} parent=31 // pred_region
        %vm264 = vcmask 523264
        %265 = vst.msk [vmem:[#allocation2] sm:$0xff] %vm264, 0.0
        %266 = vst.msk [vmem:[#allocation2 + $0x8] sm:$0xff] %vm264, 0.0
        %267 = vst.msk [vmem:[#allocation2 + $0x10] sm:$0xff] %vm264, 0.0
        %268 = vst.msk [vmem:[#allocation2 + $0x18] sm:$0xff] %vm264, 0.0
        %269 = vst.msk [vmem:[#allocation2 + $0x20] sm:$0xff] %vm264, 0.0
        %270 = vst.msk [vmem:[#allocation2 + $0x28] sm:$0xff] %vm264, 0.0
        %271 = vst.msk [vmem:[#allocation2 + $0x30] sm:$0xff] %vm264, 0.0
        %272 = vst.msk [vmem:[#allocation2 + $0x38] sm:$0xff] %vm264, 0.0
        %273 = vst.msk [vmem:[#allocation2 + $0x40] sm:$0xff] %vm264, 0.0
        %274 = vst.msk [vmem:[#allocation2 + $0x48] sm:$0xff] %vm264, 0.0
        %275 = vst.msk [vmem:[#allocation2 + $0x50] sm:$0xff] %vm264, 0.0
        %276 = vst.msk [vmem:[#allocation2 + $0x58] sm:$0xff] %vm264, 0.0
        %277 = vst.msk [vmem:[#allocation2 + $0x60] sm:$0xff] %vm264, 0.0
        %278 = vst.msk [vmem:[#allocation2 + $0x68] sm:$0xff] %vm264, 0.0
        %279 = vst.msk [vmem:[#allocation2 + $0x70] sm:$0xff] %vm264, 0.0
        %280 = vst.msk [vmem:[#allocation2 + $0x78] sm:$0xff] %vm264, 0.0
        %281 = vst.msk [vmem:[#allocation2 + $0x80] sm:$0xff] %vm264, 0.0
        %282 = vst.msk [vmem:[#allocation2 + $0x88] sm:$0xff] %vm264, 0.0
        %283 = vst.msk [vmem:[#allocation2 + $0x90] sm:$0xff] %vm264, 0.0
        %284 = vst.msk [vmem:[#allocation2 + $0x98] sm:$0xff] %vm264, 0.0
        %285 = vst.msk [vmem:[#allocation2 + $0xa0] sm:$0xff] %vm264, 0.0
        %286 = vst.msk [vmem:[#allocation2 + $0xa8] sm:$0xff] %vm264, 0.0
        %287 = vst.msk [vmem:[#allocation2 + $0xb0] sm:$0xff] %vm264, 0.0
        %288 = vst.msk [vmem:[#allocation2 + $0xb8] sm:$0xff] %vm264, 0.0
        %289 = vst.msk [vmem:[#allocation2 + $0xc0] sm:$0xff] %vm264, 0.0
        %290 = vst.msk [vmem:[#allocation2 + $0xc8] sm:$0xff] %vm264, 0.0
        %291 = vst.msk [vmem:[#allocation2 + $0xd0] sm:$0xff] %vm264, 0.0
        %292 = vst.msk [vmem:[#allocation2 + $0xd8] sm:$0xff] %vm264, 0.0
        %293 = vst.msk [vmem:[#allocation2 + $0xe0] sm:$0xff] %vm264, 0.0
        %294 = vst.msk [vmem:[#allocation2 + $0xe8] sm:$0xff] %vm264, 0.0
        %295 = vst.msk [vmem:[#allocation2 + $0xf0] sm:$0xff] %vm264, 0.0
        %296 = vst.msk [vmem:[#allocation2 + $0xf8] sm:$0xff] %vm264, 0.0
      $region36: #{tpu_custom_call.1} parent=31 // pred_fallthru
        _
      %v297 = vld [vmem:[#allocation2] sm:$0xff]
      %v298 = vld [vmem:[#allocation2 + $0x8] sm:$0xff]
      %v299 = vld [vmem:[#allocation2 + $0x10] sm:$0xff]
      %v300 = vld [vmem:[#allocation2 + $0x18] sm:$0xff]
      %v301 = vld [vmem:[#allocation2 + $0x20] sm:$0xff]
      %v302 = vld [vmem:[#allocation2 + $0x28] sm:$0xff]
      %v303 = vld [vmem:[#allocation2 + $0x30] sm:$0xff]
      %v304 = vld [vmem:[#allocation2 + $0x38] sm:$0xff]
      %v305 = vld [vmem:[#allocation2 + $0x40] sm:$0xff]
      %v306 = vld [vmem:[#allocation2 + $0x48] sm:$0xff]
      %v307 = vld [vmem:[#allocation2 + $0x50] sm:$0xff]
      %v308 = vld [vmem:[#allocation2 + $0x58] sm:$0xff]
      %v309 = vld [vmem:[#allocation2 + $0x60] sm:$0xff]
      %v310 = vld [vmem:[#allocation2 + $0x68] sm:$0xff]
      %v311 = vld [vmem:[#allocation2 + $0x70] sm:$0xff]
      %v312 = vld [vmem:[#allocation2 + $0x78] sm:$0xff]
      %v313 = vld [vmem:[#allocation2 + $0x80] sm:$0xff]
      %v314 = vld [vmem:[#allocation2 + $0x88] sm:$0xff]
      %v315 = vld [vmem:[#allocation2 + $0x90] sm:$0xff]
      %v316 = vld [vmem:[#allocation2 + $0x98] sm:$0xff]
      %v317 = vld [vmem:[#allocation2 + $0xa0] sm:$0xff]
      %v318 = vld [vmem:[#allocation2 + $0xa8] sm:$0xff]
      %v319 = vld [vmem:[#allocation2 + $0xb0] sm:$0xff]
      %v320 = vld [vmem:[#allocation2 + $0xb8] sm:$0xff]
      %v321 = vld [vmem:[#allocation2 + $0xc0] sm:$0xff]
      %v322 = vld [vmem:[#allocation2 + $0xc8] sm:$0xff]
      %v323 = vld [vmem:[#allocation2 + $0xd0] sm:$0xff]
      %v324 = vld [vmem:[#allocation2 + $0xd8] sm:$0xff]
      %v325 = vld [vmem:[#allocation2 + $0xe0] sm:$0xff]
      %v326 = vld [vmem:[#allocation2 + $0xe8] sm:$0xff]
      %v327 = vld [vmem:[#allocation2 + $0xf0] sm:$0xff]
      %v328 = vld [vmem:[#allocation2 + $0xf8] sm:$0xff]
      %v329 = vld [vmem:[%s236] sm:$0xf]
      %v330 = vld [vmem:[%s236 + $0x4] sm:$0xf]
      %v331 = vld [vmem:[%s236 + $0x8] sm:$0xf]
      %v332 = vld [vmem:[%s236 + $0xc] sm:$0xf]
      %v333 = vld [vmem:[%s236 + $0x10] sm:$0xf]
      %v334 = vld [vmem:[%s236 + $0x14] sm:$0xf]
      %v335 = vld [vmem:[%s236 + $0x18] sm:$0xf]
      %v336 = vld [vmem:[%s236 + $0x1c] sm:$0xf]
      %v337 = vld [vmem:[%s236 + $0x20] sm:$0xf]
      %v338 = vld [vmem:[%s236 + $0x24] sm:$0xf]
      %v339 = vld [vmem:[%s236 + $0x28] sm:$0xf]
      %v340 = vld [vmem:[%s236 + $0x2c] sm:$0xf]
      %v341 = vld [vmem:[%s236 + $0x30] sm:$0xf]
      %v342 = vld [vmem:[%s236 + $0x34] sm:$0xf]
      %v343 = vld [vmem:[%s236 + $0x38] sm:$0xf]
      %v344 = vld [vmem:[%s236 + $0x3c] sm:$0xf]
      %v345 = vld [vmem:[%s236 + $0x40] sm:$0xf]
      %v346 = vld [vmem:[%s236 + $0x44] sm:$0xf]
      %v347 = vld [vmem:[%s236 + $0x48] sm:$0xf]
      %v348 = vld [vmem:[%s236 + $0x4c] sm:$0xf]
      %v349 = vld [vmem:[%s236 + $0x50] sm:$0xf]
      %v350 = vld [vmem:[%s236 + $0x54] sm:$0xf]
      %v351 = vld [vmem:[%s236 + $0x58] sm:$0xf]
      %v352 = vld [vmem:[%s236 + $0x5c] sm:$0xf]
      %v353 = vld [vmem:[%s236 + $0x60] sm:$0xf]
      %v354 = vld [vmem:[%s236 + $0x64] sm:$0xf]
      %v355 = vld [vmem:[%s236 + $0x68] sm:$0xf]
      %v356 = vld [vmem:[%s236 + $0x6c] sm:$0xf]
      %v357 = vld [vmem:[%s236 + $0x70] sm:$0xf]
      %v358 = vld [vmem:[%s236 + $0x74] sm:$0xf]
      %v359 = vld [vmem:[%s236 + $0x78] sm:$0xf]
      %v360 = vld [vmem:[%s236 + $0x7c] sm:$0xf]
      %v361 = vld [vmem:[%s245] sm:$0xf]
      %v362 = vld [vmem:[%s245 + $0x4] sm:$0xf]
      %v363 = vld [vmem:[%s245 + $0x8] sm:$0xf]
      %v364 = vld [vmem:[%s245 + $0xc] sm:$0xf]
      %v365 = vld [vmem:[%s245 + $0x10] sm:$0xf]
      %v366 = vld [vmem:[%s245 + $0x14] sm:$0xf]
      %v367 = vld [vmem:[%s245 + $0x18] sm:$0xf]
      %v368 = vld [vmem:[%s245 + $0x1c] sm:$0xf]
      %v401 = vunpack.c.l.b16 %v329
      %v402 = vunpack.c.l.b16 %v330
      %v403 = vunpack.c.l.b16 %v331
      %v404 = vunpack.c.l.b16 %v332
      %v405 = vunpack.c.l.b16 %v333
      %v406 = vunpack.c.l.b16 %v334
      %v407 = vunpack.c.l.b16 %v335
      %v408 = vunpack.c.l.b16 %v336
      %v409 = vunpack.c.l.b16 %v337
      %v410 = vunpack.c.l.b16 %v338
      %v411 = vunpack.c.l.b16 %v339
      %v412 = vunpack.c.l.b16 %v340
      %v413 = vunpack.c.l.b16 %v341
      %v414 = vunpack.c.l.b16 %v342
      %v415 = vunpack.c.l.b16 %v343
      %v416 = vunpack.c.l.b16 %v344
      %v417 = vunpack.c.l.b16 %v345
      %v418 = vunpack.c.l.b16 %v346
      %v419 = vunpack.c.l.b16 %v347
      %v420 = vunpack.c.l.b16 %v348
      %v421 = vunpack.c.l.b16 %v349
      %v422 = vunpack.c.l.b16 %v350
      %v423 = vunpack.c.l.b16 %v351
      %v424 = vunpack.c.l.b16 %v352
      %v425 = vunpack.c.l.b16 %v353
      %v426 = vunpack.c.l.b16 %v354
      %v427 = vunpack.c.l.b16 %v355
      %v428 = vunpack.c.l.b16 %v356
      %v429 = vunpack.c.l.b16 %v357
      %v430 = vunpack.c.l.b16 %v358
      %v431 = vunpack.c.l.b16 %v359
      %v432 = vunpack.c.l.b16 %v360
      %v433 = vpack.c.b16 %v402, %v401
      %v434 = vpack.c.b16 %v404, %v403
      %v435 = vpack.c.b16 %v406, %v405
      %v436 = vpack.c.b16 %v408, %v407
      %v437 = vpack.c.b16 %v410, %v409
      %v438 = vpack.c.b16 %v412, %v411
      %v439 = vpack.c.b16 %v414, %v413
      %v440 = vpack.c.b16 %v416, %v415
      %v441 = vpack.c.b16 %v418, %v417
      %v442 = vpack.c.b16 %v420, %v419
      %v443 = vpack.c.b16 %v422, %v421
      %v444 = vpack.c.b16 %v424, %v423
      %v445 = vpack.c.b16 %v426, %v425
      %v446 = vpack.c.b16 %v428, %v427
      %v447 = vpack.c.b16 %v430, %v429
      %v448 = vpack.c.b16 %v432, %v431
      %v457 = vunpack.c.l.b16 %v361
      %v458 = vunpack.c.l.b16 %v362
      %v459 = vunpack.c.l.b16 %v363
      %v460 = vunpack.c.l.b16 %v364
      %v461 = vunpack.c.l.b16 %v365
      %v462 = vunpack.c.l.b16 %v366
      %v463 = vunpack.c.l.b16 %v367
      %v464 = vunpack.c.l.b16 %v368
      %v465 = vpack.c.b16 %v458, %v457
      %v466 = vpack.c.b16 %v460, %v459
      %v467 = vpack.c.b16 %v462, %v461
      %v468 = vpack.c.b16 %v464, %v463
      %vm473 = vcmask 523264
      %v475 = vsel %vm473, %v433, 0
      %v478 = vsel %vm473, %v434, 0
      %v481 = vsel %vm473, %v435, 0
      %v484 = vsel %vm473, %v436, 0
      %v487 = vsel %vm473, %v437, 0
      %v490 = vsel %vm473, %v438, 0
      %v493 = vsel %vm473, %v439, 0
      %v496 = vsel %vm473, %v440, 0
      %v499 = vsel %vm473, %v441, 0
      %v502 = vsel %vm473, %v442, 0
      %v505 = vsel %vm473, %v443, 0
      %v508 = vsel %vm473, %v444, 0
      %v511 = vsel %vm473, %v445, 0
      %v514 = vsel %vm473, %v446, 0
      %v517 = vsel %vm473, %v447, 0
      %v520 = vsel %vm473, %v448, 0
      %522 = vmatpush.bf16.msra.mxu0 0
      %523 = vmatpush.bf16.msra.mxu0 0
      %524 = vmatpush.bf16.msra.mxu0 0
      %525 = vmatpush.bf16.msra.mxu0 0
      %526 = vmatpush.bf16.msra.mxu0 %v468
      %527 = vmatpush.bf16.msra.mxu0 %v467
      %528 = vmatpush.bf16.msra.mxu0 %v466
      %529 = vmatpush.bf16.msra.mxu0 %v465
      %530 = vmatmul.bf16.gmra.mxu0 %v475
      %v531 = vpop.f32.mrf.mxu0
      %v532 = vadd.f32 0.0, %v531
      %v533 = vpop.f32.mrf.mxu0
      %v534 = vadd.f32 0.0, %v533
      %535 = vmatmul.bf16.gmra.mxu0 %v478
      %v536 = vpop.f32.mrf.mxu0
      %v537 = vadd.f32 0.0, %v536
      %v538 = vpop.f32.mrf.mxu0
      %v539 = vadd.f32 0.0, %v538
      %540 = vmatmul.bf16.gmra.mxu0 %v481
      %v541 = vpop.f32.mrf.mxu0
      %v542 = vadd.f32 0.0, %v541
      %v543 = vpop.f32.mrf.mxu0
      %v544 = vadd.f32 0.0, %v543
      %545 = vmatmul.bf16.gmra.mxu0 %v484
      %v546 = vpop.f32.mrf.mxu0
      %v547 = vadd.f32 0.0, %v546
      %v548 = vpop.f32.mrf.mxu0
      %v549 = vadd.f32 0.0, %v548
      %550 = vmatmul.bf16.gmra.mxu0 %v487
      %v551 = vpop.f32.mrf.mxu0
      %v552 = vadd.f32 0.0, %v551
      %v553 = vpop.f32.mrf.mxu0
      %v554 = vadd.f32 0.0, %v553
      %555 = vmatmul.bf16.gmra.mxu0 %v490
      %v556 = vpop.f32.mrf.mxu0
      %v557 = vadd.f32 0.0, %v556
      %v558 = vpop.f32.mrf.mxu0
      %v559 = vadd.f32 0.0, %v558
      %560 = vmatmul.bf16.gmra.mxu0 %v493
      %v561 = vpop.f32.mrf.mxu0
      %v562 = vadd.f32 0.0, %v561
      %v563 = vpop.f32.mrf.mxu0
      %v564 = vadd.f32 0.0, %v563
      %565 = vmatmul.bf16.gmra.mxu0 %v496
      %v566 = vpop.f32.mrf.mxu0
      %v567 = vadd.f32 0.0, %v566
      %v568 = vpop.f32.mrf.mxu0
      %v569 = vadd.f32 0.0, %v568
      %570 = vmatmul.bf16.gmra.mxu0 %v499
      %v571 = vpop.f32.mrf.mxu0
      %v572 = vadd.f32 0.0, %v571
      %v573 = vpop.f32.mrf.mxu0
      %v574 = vadd.f32 0.0, %v573
      %575 = vmatmul.bf16.gmra.mxu0 %v502
      %v576 = vpop.f32.mrf.mxu0
      %v577 = vadd.f32 0.0, %v576
      %v578 = vpop.f32.mrf.mxu0
      %v579 = vadd.f32 0.0, %v578
      %580 = vmatmul.bf16.gmra.mxu0 %v505
      %v581 = vpop.f32.mrf.mxu0
      %v582 = vadd.f32 0.0, %v581
      %v583 = vpop.f32.mrf.mxu0
      %v584 = vadd.f32 0.0, %v583
      %585 = vmatmul.bf16.gmra.mxu0 %v508
      %v586 = vpop.f32.mrf.mxu0
      %v587 = vadd.f32 0.0, %v586
      %v588 = vpop.f32.mrf.mxu0
      %v589 = vadd.f32 0.0, %v588
      %590 = vmatmul.bf16.gmra.mxu0 %v511
      %v591 = vpop.f32.mrf.mxu0
      %v592 = vadd.f32 0.0, %v591
      %v593 = vpop.f32.mrf.mxu0
      %v594 = vadd.f32 0.0, %v593
      %595 = vmatmul.bf16.gmra.mxu0 %v514
      %v596 = vpop.f32.mrf.mxu0
      %v597 = vadd.f32 0.0, %v596
      %v598 = vpop.f32.mrf.mxu0
      %v599 = vadd.f32 0.0, %v598
      %600 = vmatmul.bf16.gmra.mxu0 %v517
      %v601 = vpop.f32.mrf.mxu0
      %v602 = vadd.f32 0.0, %v601
      %v603 = vpop.f32.mrf.mxu0
      %v604 = vadd.f32 0.0, %v603
      %605 = vmatmul.bf16.gmra.mxu0 %v520
      %v606 = vpop.f32.mrf.mxu0
      %v607 = vadd.f32 0.0, %v606
      %v608 = vpop.f32.mrf.mxu0
      %v609 = vadd.f32 0.0, %v608
      %610 = vdwg.mxu0
      %v611 = vadd.f32 %v297, %v532
      %v612 = vadd.f32 %v298, %v534
      %v613 = vadd.f32 %v299, %v537
      %v614 = vadd.f32 %v300, %v539
      %v615 = vadd.f32 %v301, %v542
      %v616 = vadd.f32 %v302, %v544
      %v617 = vadd.f32 %v303, %v547
      %v618 = vadd.f32 %v304, %v549
      %v619 = vadd.f32 %v305, %v552
      %v620 = vadd.f32 %v306, %v554
      %v621 = vadd.f32 %v307, %v557
      %v622 = vadd.f32 %v308, %v559
      %v623 = vadd.f32 %v309, %v562
      %v624 = vadd.f32 %v310, %v564
      %v625 = vadd.f32 %v311, %v567
      %v626 = vadd.f32 %v312, %v569
      %v627 = vadd.f32 %v313, %v572
      %v628 = vadd.f32 %v314, %v574
      %v629 = vadd.f32 %v315, %v577
      %v630 = vadd.f32 %v316, %v579
      %v631 = vadd.f32 %v317, %v582
      %v632 = vadd.f32 %v318, %v584
      %v633 = vadd.f32 %v319, %v587
      %v634 = vadd.f32 %v320, %v589
      %v635 = vadd.f32 %v321, %v592
      %v636 = vadd.f32 %v322, %v594
      %v637 = vadd.f32 %v323, %v597
      %v638 = vadd.f32 %v324, %v599
      %v639 = vadd.f32 %v325, %v602
      %v640 = vadd.f32 %v326, %v604
      %v641 = vadd.f32 %v327, %v607
      %v642 = vadd.f32 %v328, %v609
      %643 = vst.msk [vmem:[#allocation2] sm:$0xff] %vm473, %v611
      %644 = vst.msk [vmem:[#allocation2 + $0x8] sm:$0xff] %vm473, %v612
      %645 = vst.msk [vmem:[#allocation2 + $0x10] sm:$0xff] %vm473, %v613
      %646 = vst.msk [vmem:[#allocation2 + $0x18] sm:$0xff] %vm473, %v614
      %647 = vst.msk [vmem:[#allocation2 + $0x20] sm:$0xff] %vm473, %v615
      %648 = vst.msk [vmem:[#allocation2 + $0x28] sm:$0xff] %vm473, %v616
      %649 = vst.msk [vmem:[#allocation2 + $0x30] sm:$0xff] %vm473, %v617
      %650 = vst.msk [vmem:[#allocation2 + $0x38] sm:$0xff] %vm473, %v618
      %651 = vst.msk [vmem:[#allocation2 + $0x40] sm:$0xff] %vm473, %v619
      %652 = vst.msk [vmem:[#allocation2 + $0x48] sm:$0xff] %vm473, %v620
      %653 = vst.msk [vmem:[#allocation2 + $0x50] sm:$0xff] %vm473, %v621
      %654 = vst.msk [vmem:[#allocation2 + $0x58] sm:$0xff] %vm473, %v622
      %655 = vst.msk [vmem:[#allocation2 + $0x60] sm:$0xff] %vm473, %v623
      %656 = vst.msk [vmem:[#allocation2 + $0x68] sm:$0xff] %vm473, %v624
      %657 = vst.msk [vmem:[#allocation2 + $0x70] sm:$0xff] %vm473, %v625
      %658 = vst.msk [vmem:[#allocation2 + $0x78] sm:$0xff] %vm473, %v626
      %659 = vst.msk [vmem:[#allocation2 + $0x80] sm:$0xff] %vm473, %v627
      %660 = vst.msk [vmem:[#allocation2 + $0x88] sm:$0xff] %vm473, %v628
      %661 = vst.msk [vmem:[#allocation2 + $0x90] sm:$0xff] %vm473, %v629
      %662 = vst.msk [vmem:[#allocation2 + $0x98] sm:$0xff] %vm473, %v630
      %663 = vst.msk [vmem:[#allocation2 + $0xa0] sm:$0xff] %vm473, %v631
      %664 = vst.msk [vmem:[#allocation2 + $0xa8] sm:$0xff] %vm473, %v632
      %665 = vst.msk [vmem:[#allocation2 + $0xb0] sm:$0xff] %vm473, %v633
      %666 = vst.msk [vmem:[#allocation2 + $0xb8] sm:$0xff] %vm473, %v634
      %667 = vst.msk [vmem:[#allocation2 + $0xc0] sm:$0xff] %vm473, %v635
      %668 = vst.msk [vmem:[#allocation2 + $0xc8] sm:$0xff] %vm473, %v636
      %669 = vst.msk [vmem:[#allocation2 + $0xd0] sm:$0xff] %vm473, %v637
      %670 = vst.msk [vmem:[#allocation2 + $0xd8] sm:$0xff] %vm473, %v638
      %671 = vst.msk [vmem:[#allocation2 + $0xe0] sm:$0xff] %vm473, %v639
      %672 = vst.msk [vmem:[#allocation2 + $0xe8] sm:$0xff] %vm473, %v640
      %673 = vst.msk [vmem:[#allocation2 + $0xf0] sm:$0xff] %vm473, %v641
      %674 = vst.msk [vmem:[#allocation2 + $0xf8] sm:$0xff] %vm473, %v642
      // Predicated region
      $region37: #{tpu_custom_call.1} parent=31 // pred_check
        %p675 = pneg %p260
      $region38: #{tpu_custom_call.1} parent=31 // pred_check_branch
        %677 = sbr.rel (%p675) target = $region40
      $region39: #{tpu_custom_call.1} parent=31 // pred_region
        %v678 = vld [vmem:[#allocation2] sm:$0xff]
        %v679 = vld [vmem:[#allocation2 + $0x8] sm:$0xff]
        %v680 = vld [vmem:[#allocation2 + $0x10] sm:$0xff]
        %v681 = vld [vmem:[#allocation2 + $0x18] sm:$0xff]
        %v682 = vld [vmem:[#allocation2 + $0x20] sm:$0xff]
        %v683 = vld [vmem:[#allocation2 + $0x28] sm:$0xff]
        %v684 = vld [vmem:[#allocation2 + $0x30] sm:$0xff]
        %v685 = vld [vmem:[#allocation2 + $0x38] sm:$0xff]
        %v686 = vld [vmem:[#allocation2 + $0x40] sm:$0xff]
        %v687 = vld [vmem:[#allocation2 + $0x48] sm:$0xff]
        %v688 = vld [vmem:[#allocation2 + $0x50] sm:$0xff]
        %v689 = vld [vmem:[#allocation2 + $0x58] sm:$0xff]
        %v690 = vld [vmem:[#allocation2 + $0x60] sm:$0xff]
        %v691 = vld [vmem:[#allocation2 + $0x68] sm:$0xff]
        %v692 = vld [vmem:[#allocation2 + $0x70] sm:$0xff]
        %v693 = vld [vmem:[#allocation2 + $0x78] sm:$0xff]
        %v694 = vld [vmem:[#allocation2 + $0x80] sm:$0xff]
        %v695 = vld [vmem:[#allocation2 + $0x88] sm:$0xff]
        %v696 = vld [vmem:[#allocation2 + $0x90] sm:$0xff]
        %v697 = vld [vmem:[#allocation2 + $0x98] sm:$0xff]
        %v698 = vld [vmem:[#allocation2 + $0xa0] sm:$0xff]
        %v699 = vld [vmem:[#allocation2 + $0xa8] sm:$0xff]
        %v700 = vld [vmem:[#allocation2 + $0xb0] sm:$0xff]
        %v701 = vld [vmem:[#allocation2 + $0xb8] sm:$0xff]
        %v702 = vld [vmem:[#allocation2 + $0xc0] sm:$0xff]
        %v703 = vld [vmem:[#allocation2 + $0xc8] sm:$0xff]
        %v704 = vld [vmem:[#allocation2 + $0xd0] sm:$0xff]
        %v705 = vld [vmem:[#allocation2 + $0xd8] sm:$0xff]
        %v706 = vld [vmem:[#allocation2 + $0xe0] sm:$0xff]
        %v707 = vld [vmem:[#allocation2 + $0xe8] sm:$0xff]
        %v708 = vld [vmem:[#allocation2 + $0xf0] sm:$0xff]
        %v709 = vld [vmem:[#allocation2 + $0xf8] sm:$0xff]
        %v710 = vld [vmem:[%s249] sm:$0x1]
        %v712 = vperm.slane %v710, 0
        %v714 = vadd.f32 %v678, %v712
        %v715 = vadd.f32 %v679, %v712
        %v716 = vadd.f32 %v680, %v712
        %v717 = vadd.f32 %v681, %v712
        %v718 = vadd.f32 %v682, %v712
        %v719 = vadd.f32 %v683, %v712
        %v720 = vadd.f32 %v684, %v712
        %v721 = vadd.f32 %v685, %v712
        %v722 = vadd.f32 %v686, %v712
        %v723 = vadd.f32 %v687, %v712
        %v724 = vadd.f32 %v688, %v712
        %v725 = vadd.f32 %v689, %v712
        %v726 = vadd.f32 %v690, %v712
        %v727 = vadd.f32 %v691, %v712
        %v728 = vadd.f32 %v692, %v712
        %v729 = vadd.f32 %v693, %v712
        %v730 = vadd.f32 %v694, %v712
        %v731 = vadd.f32 %v695, %v712
        %v732 = vadd.f32 %v696, %v712
        %v733 = vadd.f32 %v697, %v712
        %v734 = vadd.f32 %v698, %v712
        %v735 = vadd.f32 %v699, %v712
        %v736 = vadd.f32 %v700, %v712
        %v737 = vadd.f32 %v701, %v712
        %v738 = vadd.f32 %v702, %v712
        %v739 = vadd.f32 %v703, %v712
        %v740 = vadd.f32 %v704, %v712
        %v741 = vadd.f32 %v705, %v712
        %v742 = vadd.f32 %v706, %v712
        %v743 = vadd.f32 %v707, %v712
        %v744 = vadd.f32 %v708, %v712
        %v745 = vadd.f32 %v709, %v712
        %v746 = vmax.f32 %v714, 0.0
        %v747 = vmax.f32 %v715, 0.0
        %v748 = vmax.f32 %v716, 0.0
        %v749 = vmax.f32 %v717, 0.0
        %v750 = vmax.f32 %v718, 0.0
        %v751 = vmax.f32 %v719, 0.0
        %v752 = vmax.f32 %v720, 0.0
        %v753 = vmax.f32 %v721, 0.0
        %v754 = vmax.f32 %v722, 0.0
        %v755 = vmax.f32 %v723, 0.0
        %v756 = vmax.f32 %v724, 0.0
        %v757 = vmax.f32 %v725, 0.0
        %v758 = vmax.f32 %v726, 0.0
        %v759 = vmax.f32 %v727, 0.0
        %v760 = vmax.f32 %v728, 0.0
        %v761 = vmax.f32 %v729, 0.0
        %v762 = vmax.f32 %v730, 0.0
        %v763 = vmax.f32 %v731, 0.0
        %v764 = vmax.f32 %v732, 0.0
        %v765 = vmax.f32 %v733, 0.0
        %v766 = vmax.f32 %v734, 0.0
        %v767 = vmax.f32 %v735, 0.0
        %v768 = vmax.f32 %v736, 0.0
        %v769 = vmax.f32 %v737, 0.0
        %v770 = vmax.f32 %v738, 0.0
        %v771 = vmax.f32 %v739, 0.0
        %v772 = vmax.f32 %v740, 0.0
        %v773 = vmax.f32 %v741, 0.0
        %v774 = vmax.f32 %v742, 0.0
        %v775 = vmax.f32 %v743, 0.0
        %v776 = vmax.f32 %v744, 0.0
        %v777 = vmax.f32 %v745, 0.0
        %v778 = vpack.c.bf16 %v746, %v746
        %v779 = vpack.c.bf16 %v747, %v747
        %v780 = vpack.c.bf16 %v748, %v748
        %v781 = vpack.c.bf16 %v749, %v749
        %v782 = vpack.c.bf16 %v750, %v750
        %v783 = vpack.c.bf16 %v751, %v751
        %v784 = vpack.c.bf16 %v752, %v752
        %v785 = vpack.c.bf16 %v753, %v753
        %v786 = vpack.c.bf16 %v754, %v754
        %v787 = vpack.c.bf16 %v755, %v755
        %v788 = vpack.c.bf16 %v756, %v756
        %v789 = vpack.c.bf16 %v757, %v757
        %v790 = vpack.c.bf16 %v758, %v758
        %v791 = vpack.c.bf16 %v759, %v759
        %v792 = vpack.c.bf16 %v760, %v760
        %v793 = vpack.c.bf16 %v761, %v761
        %v794 = vpack.c.bf16 %v762, %v762
        %v795 = vpack.c.bf16 %v763, %v763
        %v796 = vpack.c.bf16 %v764, %v764
        %v797 = vpack.c.bf16 %v765, %v765
        %v798 = vpack.c.bf16 %v766, %v766
        %v799 = vpack.c.bf16 %v767, %v767
        %v800 = vpack.c.bf16 %v768, %v768
        %v801 = vpack.c.bf16 %v769, %v769
        %v802 = vpack.c.bf16 %v770, %v770
        %v803 = vpack.c.bf16 %v771, %v771
        %v804 = vpack.c.bf16 %v772, %v772
        %v805 = vpack.c.bf16 %v773, %v773
        %v806 = vpack.c.bf16 %v774, %v774
        %v807 = vpack.c.bf16 %v775, %v775
        %v808 = vpack.c.bf16 %v776, %v776
        %v809 = vpack.c.bf16 %v777, %v777
        %vm810 = vcmask 519168
        %811 = vst.msk [vmem:[%s257] sm:$0xf] %vm810, %v778
        %812 = vst.msk [vmem:[%s257 + $0x4] sm:$0xf] %vm810, %v779
        %813 = vst.msk [vmem:[%s257 + $0x8] sm:$0xf] %vm810, %v780
        %814 = vst.msk [vmem:[%s257 + $0xc] sm:$0xf] %vm810, %v781
        %815 = vst.msk [vmem:[%s257 + $0x10] sm:$0xf] %vm810, %v782
        %816 = vst.msk [vmem:[%s257 + $0x14] sm:$0xf] %vm810, %v783
        %817 = vst.msk [vmem:[%s257 + $0x18] sm:$0xf] %vm810, %v784
        %818 = vst.msk [vmem:[%s257 + $0x1c] sm:$0xf] %vm810, %v785
        %819 = vst.msk [vmem:[%s257 + $0x20] sm:$0xf] %vm810, %v786
        %820 = vst.msk [vmem:[%s257 + $0x24] sm:$0xf] %vm810, %v787
        %821 = vst.msk [vmem:[%s257 + $0x28] sm:$0xf] %vm810, %v788
        %822 = vst.msk [vmem:[%s257 + $0x2c] sm:$0xf] %vm810, %v789
        %823 = vst.msk [vmem:[%s257 + $0x30] sm:$0xf] %vm810, %v790
        %824 = vst.msk [vmem:[%s257 + $0x34] sm:$0xf] %vm810, %v791
        %825 = vst.msk [vmem:[%s257 + $0x38] sm:$0xf] %vm810, %v792
        %826 = vst.msk [vmem:[%s257 + $0x3c] sm:$0xf] %vm810, %v793
        %827 = vst.msk [vmem:[%s257 + $0x40] sm:$0xf] %vm810, %v794
        %828 = vst.msk [vmem:[%s257 + $0x44] sm:$0xf] %vm810, %v795
        %829 = vst.msk [vmem:[%s257 + $0x48] sm:$0xf] %vm810, %v796
        %830 = vst.msk [vmem:[%s257 + $0x4c] sm:$0xf] %vm810, %v797
        %831 = vst.msk [vmem:[%s257 + $0x50] sm:$0xf] %vm810, %v798
        %832 = vst.msk [vmem:[%s257 + $0x54] sm:$0xf] %vm810, %v799
        %833 = vst.msk [vmem:[%s257 + $0x58] sm:$0xf] %vm810, %v800
        %834 = vst.msk [vmem:[%s257 + $0x5c] sm:$0xf] %vm810, %v801
        %835 = vst.msk [vmem:[%s257 + $0x60] sm:$0xf] %vm810, %v802
        %836 = vst.msk [vmem:[%s257 + $0x64] sm:$0xf] %vm810, %v803
        %837 = vst.msk [vmem:[%s257 + $0x68] sm:$0xf] %vm810, %v804
        %838 = vst.msk [vmem:[%s257 + $0x6c] sm:$0xf] %vm810, %v805
        %839 = vst.msk [vmem:[%s257 + $0x70] sm:$0xf] %vm810, %v806
        %840 = vst.msk [vmem:[%s257 + $0x74] sm:$0xf] %vm810, %v807
        %841 = vst.msk [vmem:[%s257 + $0x78] sm:$0xf] %vm810, %v808
        %842 = vst.msk [vmem:[%s257 + $0x7c] sm:$0xf] %vm810, %v809
      $region40: #{tpu_custom_call.1} parent=31 // pred_fallthru
        _
      %s843 = smul.u32 32, %s19
      %p844 = scmp.lt.s32.totalorder %s843, 63
      %s845 = scalar_select %p844, %s843, 63
      %p846 = scmp.lt.s32.totalorder %s20, 0
      %s847 = scalar_select %p846, %s20, 0
      %s848 = sadd.s32 %s847, %s845
      %s849 = smul.addr %s848, 4
      %s850 = scalar_lea.vmem %s3, %s849
      // Predicated region
      $region41: #{tpu_custom_call.1} parent=31 // pred_check
        %p851 = pneg %p135
      $region42: #{tpu_custom_call.1} parent=31 // pred_check_branch
        %853 = sbr.rel (%p851) target = $region44
      $region43: #{tpu_custom_call.1} parent=31 // pred_region
        %s854 = smul.u32 32, %s19
      $region44: #{tpu_custom_call.1} parent=31 // pred_fallthru
        _
    $region32: #{tpu_custom_call.1} parent=5 // pred_fallthru
      _
    %p855 = scmp.le.s32.totalorder 2, %s9
    // Predicated region
    $region45: #{tpu_custom_call.1} parent=5 // pred_check
      %p856 = pneg %p855
    $region46: #{tpu_custom_call.1} parent=5 // pred_check_branch
      %858 = sbr.rel (%p856) target = $region48
    $region47: #{tpu_custom_call.1} parent=5 // pred_region
      %s859 = ssub.s32 %s9, 2
      // Predicated region
      $region49: #{tpu_custom_call.1} parent=47 // pred_check
        %p860 = pneg %p141
      $region50: #{tpu_custom_call.1} parent=47 // pred_check_branch
        %862 = sbr.rel (%p860) target = $region52
      $region51: #{tpu_custom_call.1} parent=47 // pred_region
        %s863 = smul.u32 32, %s22
        %p864 = scmp.lt.s32.totalorder %s863, 63
        %s865 = scalar_select %p864, %s863, 63
        %p866 = scmp.lt.s32.totalorder %s23, 0
        %s867 = scalar_select %p866, %s23, 0
        %s868 = sadd.s32 %s867, %s865
        %s869 = smul.addr %s868, 4
        %s870 = scalar_lea.vmem %s3, %s869
      $region52: #{tpu_custom_call.1} parent=47 // pred_fallthru
        _
    $region48: #{tpu_custom_call.1} parent=5 // pred_fallthru
      _
  $region6: #{tpu_custom_call.1} parent=0 // loop_footer
    %s13 = sadd.s32 1, %s9
  $region7: #{tpu_custom_call.1} parent=0 // loop_footer_branch
    %8 = sbr.rel target = $region3
  $region8: #{tpu_custom_call.1} parent=0 // loop_exit
    _

</llo_original>
